<compile_context>
chip_gen: v7x
topology: tpu7x:2x2x1
jax: 0.10.0
libtpu: 0.0.40
codegen_flags: <defaults>
</compile_context>

<pallas_src>
import jax
import jax.numpy as jnp
from jax.experimental import pallas as pl
from jax.experimental.pallas import tpu as pltpu

BERT_DIM = 32          # small stand-in for config.BERT_DIM (=768)


# ----------------------------------------------------------------------------
# Fused kernel: per grid step, NB pairs.
#   h      = tanh(emb @ W_enc + b_enc)                     (NB*L, H)  in VMEM
#   pooled = P @ h                                         (2*NB, H)  one MXU matmul
#            (P rows 0..NB-1 = query weights, NB..2NB-1 = support weights)
#   hidden = relu(q_rep @ Wp_q + s_rep @ Wp_s + bp)        (NB, 2H)
#   score  = wl (1,2H) x hidden^T + bl                     (1, NB)    row store
# P is a block-structured pooling matrix: 0.5*one-hot(span endpoints) with the
# attention mask already folded in (streamed via `sel`).
# ----------------------------------------------------------------------------
def _fused_kernel(emb_ref, sel_ref, w_enc_ref, b_enc_ref,
                  wpq_ref, wps_ref, bp_ref, wl_ref, bl_ref, out_ref):
    nbl, _ = emb_ref.shape          # NB * L rows in this block
    nb = out_ref.shape[1]           # pairs per block
    seq = nbl // nb                 # L

    # ---- surrogate encoder: h stays in VMEM (no HBM round-trip) ----
    x = emb_ref[...]                                                    # (NB*L, H)
    h = jnp.tanh(jnp.dot(x, w_enc_ref[...],
                         preferred_element_type=jnp.float32) + b_enc_ref[...])

    # ---- span mean pooling as a single stacked MXU matmul ----
    row = jax.lax.broadcasted_iota(jnp.int32, (2 * nb, nbl), 0)
    col = jax.lax.broadcasted_iota(jnp.int32, (2 * nb, nbl), 1)
    start = (row % nb) * seq
    blk = ((col >= start) & (col < start + seq)).astype(jnp.float32)    # (2NB, NB*L)

    sel = sel_ref[...]                                                  # (2, NB*L)
    sel_q = sel[0:1, :]             # query 0.5*one-hot*mask weights   (1, NB*L)
    sel_s = sel[1:2, :]             # support weights                  (1, NB*L)
    pmat = blk * jnp.where(row < nb, sel_q, sel_s)                      # (2NB, NB*L)
    pooled = jnp.dot(pmat, h, preferred_element_type=jnp.float32)       # (2NB, H)
    q_rep = pooled[:nb, :]                                              # (NB, H)
    s_rep = pooled[nb:, :]                                              # (NB, H)

    # ---- scoring head: Linear(ReLU(Proj(concat))) as split, batched matmuls ----
    pre = (jnp.dot(q_rep, wpq_ref[...], preferred_element_type=jnp.float32)
           + jnp.dot(s_rep, wps_ref[...], preferred_element_type=jnp.float32)
           + bp_ref[...])                                               # (NB, 2H)
    hidden = jnp.maximum(pre, 0.0)

    # (1, 2H) contracted with (NB, 2H) on the last dim -> (1, NB) score row.
    score = jax.lax.dot_general(
        wl_ref[...], hidden,
        dimension_numbers=(((1,), (1,)), ((), ())),
        preferred_element_type=jnp.float32) + bl_ref[...]               # (1, NB)
    out_ref[...] = score


def fused_pair_scores(emb_flat, sel, w_enc, b_enc, wp_q, wp_s, bp, wl_row, bl,
                      *, nb, seq_len):
    total_rows, H = emb_flat.shape
    nbl = nb * seq_len
    num_blocks = total_rows // nbl
    H2 = 2 * H
    return pl.pallas_call(
        _fused_kernel,
        out_shape=jax.ShapeDtypeStruct((num_blocks, nb), jnp.float32),
        grid=(num_blocks,),
        in_specs=[
            pl.BlockSpec((nbl, H), lambda i: (i, 0)),     # emb rows for NB pairs
            pl.BlockSpec((2, nbl), lambda i: (0, i)),     # pooling weights (q, s)
            pl.BlockSpec((H, H), lambda i: (0, 0)),       # W_enc
            pl.BlockSpec((1, H), lambda i: (0, 0)),       # b_enc
            pl.BlockSpec((H, H2), lambda i: (0, 0)),      # Wp (query half)
            pl.BlockSpec((H, H2), lambda i: (0, 0)),      # Wp (support half)
            pl.BlockSpec((1, H2), lambda i: (0, 0)),      # bp
            pl.BlockSpec((1, H2), lambda i: (0, 0)),      # wl (row layout)
            pl.BlockSpec((1, 1), lambda i: (0, 0)),       # bl
        ],
        out_specs=pl.BlockSpec((1, nb), lambda i: (i, 0)),
        compiler_params=pltpu.CompilerParams(dimension_semantics=("parallel",)),
    )(emb_flat, sel, w_enc, b_enc, wp_q, wp_s, bp, wl_row, bl)


# ----------------------------------------------------------------------------
# Full forward (glue in plain JAX: embedding lookup, span one-hot weights,
# padding/reshape).  Out-of-range span indices simply produce all-zero
# pooling weights (no unchecked VMEM reads).
# ----------------------------------------------------------------------------
def pair_context_encoder_forward(params, paired_ids, token_type_ids,
                                 attention_mask, paired_spans,
                                 *, pairs_per_block=8):
    num_queries, num_supports, max_length = paired_ids.shape
    N = num_queries * num_supports
    L = max_length
    H = BERT_DIM
    assert pairs_per_block % 8 == 0, "pairs_per_block must be sublane-aligned"

    ids = paired_ids.reshape(N, L)
    tt = token_type_ids.reshape(N, L)
    mask = attention_mask.reshape(N, L).astype(jnp.float32)
    spans = paired_spans.reshape(N, 2, 2).astype(jnp.int32)

    # Embedding lookup (glue, like the original nn.Embedding gather).
    emb = (jnp.take(params["word_emb"], ids, axis=0)
           + jnp.take(params["type_emb"], tt, axis=0)
           + params["pos_emb"][None, :, :]).astype(jnp.float32)          # (N, L, H)

    # Span pooling weights: 0.5 * (one_hot(start) + one_hot(end)); the
    # attention-mask gate on h is folded in here since h only feeds pooling.
    l_idx = jnp.arange(L, dtype=jnp.int32)[None, :]

    def endpoint_weights(se):   # se: (N, 2) span endpoints
        return 0.5 * ((l_idx == se[:, 0:1]).astype(jnp.float32)
                      + (l_idx == se[:, 1:2]).astype(jnp.float32))

    q_sel = endpoint_weights(spans[:, 0, :]) * mask                      # (N, L)
    s_sel = endpoint_weights(spans[:, 1, :]) * mask                      # (N, L)

    # Pad pair count to a multiple of pairs_per_block and flatten rows.
    nb = pairs_per_block
    num_blocks = (N + nb - 1) // nb
    n_pad = num_blocks * nb - N
    emb_flat = emb.reshape(N * L, H)
    sel = jnp.stack([q_sel.reshape(N * L), s_sel.reshape(N * L)], axis=0)  # (2, N*L)
    if n_pad:
        emb_flat = jnp.pad(emb_flat, ((0, n_pad * L), (0, 0)))
        sel = jnp.pad(sel, ((0, 0), (0, n_pad * L)))

    scores = fused_pair_scores(emb_flat, sel,
                               params["w_enc"], params["b_enc"],
                               params["wp_q"], params["wp_s"], params["bp"],
                               params["wl_row"], params["bl"],
                               nb=nb, seq_len=L)                          # (blocks, nb)

    return scores.reshape(-1)[:N].reshape(num_queries, num_supports)     # squeeze(-1)


# ----------------------------------------------------------------------------
# Pure-JAX reference for verification (mirrors the module semantics).
# ----------------------------------------------------------------------------
def reference_forward(params, paired_ids, token_type_ids, attention_mask,
                      paired_spans):
    num_queries, num_supports, max_length = paired_ids.shape
    N = num_queries * num_supports
    L = max_length

    ids = paired_ids.reshape(N, L)
    tt = token_type_ids.reshape(N, L)
    mask = attention_mask.reshape(N, L).astype(jnp.float32)
    spans = paired_spans.reshape(N, 2, 2)

    emb = (jnp.take(params["word_emb"], ids, axis=0)
           + jnp.take(params["type_emb"], tt, axis=0)
           + params["pos_emb"][None, :, :]).astype(jnp.float32)
    h = jnp.tanh(emb @ params["w_enc"] + params["b_enc"]) * mask[..., None]

    idx = jnp.arange(N)
    q_rep = (h[idx, spans[:, 0, 0]] + h[idx, spans[:, 0, 1]]) * 0.5
    s_rep = (h[idx, spans[:, 1, 0]] + h[idx, spans[:, 1, 1]]) * 0.5
    rep = jnp.concatenate([q_rep, s_rep], axis=-1)                       # (N, 2H)

    wp = jnp.concatenate([params["wp_q"], params["wp_s"]], axis=0)       # (2H, 2H)
    hidden = jnp.maximum(rep @ wp + params["bp"], 0.0)
    score = hidden @ params["wl_row"].T + params["bl"]                   # (N, 1)
    return score.reshape(num_queries, num_supports)


if __name__ == "__main__":
    NQ, NS, L, H = 2, 3, 16, BERT_DIM
    VOCAB = 50
    key = jax.random.PRNGKey(0)
    keys = jax.random.split(key, 12)

    # Deterministic synthetic parameters.
    params = {
        "word_emb": 0.05 * jax.random.normal(keys[0], (VOCAB, H), jnp.float32),
        "type_emb": 0.05 * jax.random.normal(keys[1], (2, H), jnp.float32),
        "pos_emb":  0.05 * jax.random.normal(keys[2], (L, H), jnp.float32),
        "w_enc":    0.10 * jax.random.normal(keys[3], (H, H), jnp.float32),
        "b_enc":    0.01 * jax.random.normal(keys[4], (1, H), jnp.float32),
        # self.proj: nn.Linear(2H, 2H), stored transposed and split in halves.
        "wp_q":     0.10 * jax.random.normal(keys[5], (H, 2 * H), jnp.float32),
        "wp_s":     0.10 * jax.random.normal(keys[6], (H, 2 * H), jnp.float32),
        "bp":       0.01 * jax.random.normal(keys[7], (1, 2 * H), jnp.float32),
        # self.linear: nn.Linear(2H, 1), stored as a (1, 2H) row.
        "wl_row":   0.10 * jax.random.normal(keys[8], (1, 2 * H), jnp.float32),
        "bl":       0.01 * jax.random.normal(keys[9], (1, 1), jnp.float32),
    }

    # Deterministic synthetic inputs.
    paired_ids = jax.random.randint(keys[10], (NQ, NS, L), 0, VOCAB, jnp.int32)
    token_type_ids = jax.random.randint(keys[11], (NQ, NS, L), 0, 2, jnp.int32)
    lengths = jax.random.randint(jax.random.fold_in(key, 1), (NQ, NS, 1),
                                 L // 2, L + 1, jnp.int32)
    attention_mask = (jnp.arange(L)[None, None, :] < lengths).astype(jnp.int32)
    paired_spans = jax.random.randint(jax.random.fold_in(key, 2),
                                      (NQ, NS, 2, 2), 1, L - 1, jnp.int32)

    out = pair_context_encoder_forward(params, paired_ids, token_type_ids,
                                       attention_mask, paired_spans)
    out = jax.block_until_ready(out)

    ref = reference_forward(params, paired_ids, token_type_ids, attention_mask,
                            paired_spans)
    assert out.shape == (NQ, NS), out.shape
    assert jnp.allclose(out, ref, atol=1e-5, rtol=1e-5), (out, ref)
    print("KERNEL_OK")
</pallas_src>

<mosaic_0001>
module attributes {stable_mosaic.version = 11 : i64} {
  func.func @_fused_kernel(%arg0: i32, %arg1: memref<128x32xf32, #tpu.memory_space<vmem>>, %arg2: memref<2x128xf32, #tpu.memory_space<vmem>>, %arg3: memref<32x32xf32, #tpu.memory_space<vmem>>, %arg4: memref<1x32xf32, #tpu.memory_space<vmem>>, %arg5: memref<32x64xf32, #tpu.memory_space<vmem>>, %arg6: memref<32x64xf32, #tpu.memory_space<vmem>>, %arg7: memref<1x64xf32, #tpu.memory_space<vmem>>, %arg8: memref<1x64xf32, #tpu.memory_space<vmem>>, %arg9: memref<1x1xf32, #tpu.memory_space<vmem>>, %arg10: memref<1x8xf32, #tpu.memory_space<vmem>>) attributes {dimension_semantics = [#tpu.dimension_semantics<parallel>], iteration_bounds = array<i64: 1>, scalar_prefetch = 0 : i64, scratch_operands = 0 : i64, tpu.core_type = #tpu.core_type<tc>, window_params = [{transform_indices = @transform_0, window_bounds = array<i64: 128, 32>}, {transform_indices = @transform_1, window_bounds = array<i64: 2, 128>}, {pipeline_mode = #tpu.pipeline_mode<synchronous>, transform_indices = @transform_2, window_bounds = array<i64: 32, 32>}, {pipeline_mode = #tpu.pipeline_mode<synchronous>, transform_indices = @transform_3, window_bounds = array<i64: 1, 32>}, {pipeline_mode = #tpu.pipeline_mode<synchronous>, transform_indices = @transform_4, window_bounds = array<i64: 32, 64>}, {pipeline_mode = #tpu.pipeline_mode<synchronous>, transform_indices = @transform_5, window_bounds = array<i64: 32, 64>}, {pipeline_mode = #tpu.pipeline_mode<synchronous>, transform_indices = @transform_6, window_bounds = array<i64: 1, 64>}, {pipeline_mode = #tpu.pipeline_mode<synchronous>, transform_indices = @transform_7, window_bounds = array<i64: 1, 64>}, {pipeline_mode = #tpu.pipeline_mode<synchronous>, transform_indices = @transform_8, window_bounds = array<i64: 1, 1>}, {transform_indices = @transform_9, window_bounds = array<i64: 1, 8>}]} {
    %c0 = arith.constant 0 : index
    %c0_0 = arith.constant 0 : index
    %0 = vector.load %arg1[%c0, %c0_0] : memref<128x32xf32, #tpu.memory_space<vmem>>, vector<128x32xf32>
    %c0_1 = arith.constant 0 : index
    %c0_2 = arith.constant 0 : index
    %1 = vector.load %arg3[%c0_1, %c0_2] : memref<32x32xf32, #tpu.memory_space<vmem>>, vector<32x32xf32>
    %cst = arith.constant dense<0.000000e+00> : vector<128x32xf32>
    %2 = tpu.matmul %0, %1, %cst {dimension_numbers = #tpu.dot_dimension_numbers<[1], [0], [0], [1], [0, 0, 1, 1], [], []>} : vector<128x32xf32>, vector<32x32xf32>, vector<128x32xf32> -> vector<128x32xf32>
    %c0_3 = arith.constant 0 : index
    %c0_4 = arith.constant 0 : index
    %3 = vector.load %arg4[%c0_3, %c0_4] : memref<1x32xf32, #tpu.memory_space<vmem>>, vector<1x32xf32>
    %4 = vector.broadcast %3 : vector<1x32xf32> to vector<128x32xf32>
    %5 = arith.addf %2, %4 : vector<128x32xf32>
    %6 = math.tanh %5 : vector<128x32xf32>
    %7 = tpu.iota {dimensions = array<i32: 0>} : vector<16x128xi32>
    %8 = tpu.iota {dimensions = array<i32: 1>} : vector<16x128xi32>
    %c8_i32 = arith.constant 8 : i32
    %c0_i32 = arith.constant 0 : i32
    %9 = arith.cmpi eq, %c8_i32, %c0_i32 : i32
    %c1_i32 = arith.constant 1 : i32
    %10 = arith.select %9, %c1_i32, %c8_i32 : i32
    %11 = vector.broadcast %10 : i32 to vector<16x128xi32>
    %12 = arith.remsi %7, %11 : vector<16x128xi32>
    %c0_i32_5 = arith.constant 0 : i32
    %13 = vector.broadcast %c0_i32_5 : i32 to vector<16x128xi32>
    %14 = arith.cmpi ne, %12, %13 : vector<16x128xi32>
    %c0_i32_6 = arith.constant 0 : i32
    %15 = vector.broadcast %c0_i32_6 : i32 to vector<16x128xi32>
    %16 = arith.cmpi slt, %12, %15 : vector<16x128xi32>
    %c0_i32_7 = arith.constant 0 : i32
    %17 = arith.cmpi slt, %10, %c0_i32_7 : i32
    %18 = vector.broadcast %17 : i1 to vector<16x128xi1>
    %19 = vector.broadcast %18 : vector<16x128xi1> to vector<16x128xi1>
    %20 = arith.xori %16, %19 : vector<16x128xi1>
    %21 = arith.andi %20, %14 : vector<16x128xi1>
    %22 = vector.broadcast %10 : i32 to vector<16x128xi32>
    %23 = arith.addi %12, %22 : vector<16x128xi32>
    %24 = arith.select %21, %23, %12 : vector<16x128xi1>, vector<16x128xi32>
    %c16_i32 = arith.constant 16 : i32
    %25 = vector.broadcast %c16_i32 : i32 to vector<16x128xi32>
    %26 = arith.muli %24, %25 : vector<16x128xi32>
    %27 = arith.cmpi sge, %8, %26 : vector<16x128xi32>
    %c16_i32_8 = arith.constant 16 : i32
    %28 = vector.broadcast %c16_i32_8 : i32 to vector<16x128xi32>
    %29 = arith.addi %26, %28 : vector<16x128xi32>
    %30 = arith.cmpi slt, %8, %29 : vector<16x128xi32>
    %31 = arith.andi %27, %30 : vector<16x128xi1>
    %32 = arith.extui %31 : vector<16x128xi1> to vector<16x128xi32>
    %33 = arith.sitofp %32 : vector<16x128xi32> to vector<16x128xf32>
    %c0_9 = arith.constant 0 : index
    %c0_10 = arith.constant 0 : index
    %34 = vector.load %arg2[%c0_9, %c0_10] : memref<2x128xf32, #tpu.memory_space<vmem>>, vector<2x128xf32>
    %35 = vector.extract_strided_slice %34 {offsets = [0, 0], sizes = [1, 128], strides = [1, 1]} : vector<2x128xf32> to vector<1x128xf32>
    %36 = vector.extract_strided_slice %34 {offsets = [1, 0], sizes = [1, 128], strides = [1, 1]} : vector<2x128xf32> to vector<1x128xf32>
    %c8_i32_11 = arith.constant 8 : i32
    %37 = vector.broadcast %c8_i32_11 : i32 to vector<16x128xi32>
    %38 = arith.cmpi slt, %7, %37 : vector<16x128xi32>
    %39 = vector.shape_cast %35 : vector<1x128xf32> to vector<1x128xf32>
    %40 = vector.broadcast %39 : vector<1x128xf32> to vector<16x128xf32>
    %41 = vector.shape_cast %36 : vector<1x128xf32> to vector<1x128xf32>
    %42 = vector.broadcast %41 : vector<1x128xf32> to vector<16x128xf32>
    %43 = arith.select %38, %40, %42 : vector<16x128xi1>, vector<16x128xf32>
    %44 = arith.mulf %33, %43 : vector<16x128xf32>
    %cst_12 = arith.constant dense<0.000000e+00> : vector<16x32xf32>
    %45 = tpu.matmul %44, %6, %cst_12 {dimension_numbers = #tpu.dot_dimension_numbers<[1], [0], [0], [1], [0, 0, 1, 1], [], []>} : vector<16x128xf32>, vector<128x32xf32>, vector<16x32xf32> -> vector<16x32xf32>
    %46 = vector.extract_strided_slice %45 {offsets = [0, 0], sizes = [8, 32], strides = [1, 1]} : vector<16x32xf32> to vector<8x32xf32>
    %47 = vector.extract_strided_slice %45 {offsets = [8, 0], sizes = [8, 32], strides = [1, 1]} : vector<16x32xf32> to vector<8x32xf32>
    %c0_13 = arith.constant 0 : index
    %c0_14 = arith.constant 0 : index
    %48 = vector.load %arg5[%c0_13, %c0_14] : memref<32x64xf32, #tpu.memory_space<vmem>>, vector<32x64xf32>
    %cst_15 = arith.constant dense<0.000000e+00> : vector<8x64xf32>
    %49 = tpu.matmul %46, %48, %cst_15 {dimension_numbers = #tpu.dot_dimension_numbers<[1], [0], [0], [1], [0, 0, 1, 1], [], []>} : vector<8x32xf32>, vector<32x64xf32>, vector<8x64xf32> -> vector<8x64xf32>
    %c0_16 = arith.constant 0 : index
    %c0_17 = arith.constant 0 : index
    %50 = vector.load %arg6[%c0_16, %c0_17] : memref<32x64xf32, #tpu.memory_space<vmem>>, vector<32x64xf32>
    %cst_18 = arith.constant dense<0.000000e+00> : vector<8x64xf32>
    %51 = tpu.matmul %47, %50, %cst_18 {dimension_numbers = #tpu.dot_dimension_numbers<[1], [0], [0], [1], [0, 0, 1, 1], [], []>} : vector<8x32xf32>, vector<32x64xf32>, vector<8x64xf32> -> vector<8x64xf32>
    %52 = arith.addf %49, %51 : vector<8x64xf32>
    %c0_19 = arith.constant 0 : index
    %c0_20 = arith.constant 0 : index
    %53 = vector.load %arg7[%c0_19, %c0_20] : memref<1x64xf32, #tpu.memory_space<vmem>>, vector<1x64xf32>
    %54 = vector.broadcast %53 : vector<1x64xf32> to vector<8x64xf32>
    %55 = arith.addf %52, %54 : vector<8x64xf32>
    %cst_21 = arith.constant 0.000000e+00 : f32
    %56 = vector.broadcast %cst_21 : f32 to vector<8x64xf32>
    %57 = arith.maximumf %55, %56 : vector<8x64xf32>
    %c0_22 = arith.constant 0 : index
    %c0_23 = arith.constant 0 : index
    %58 = vector.load %arg8[%c0_22, %c0_23] : memref<1x64xf32, #tpu.memory_space<vmem>>, vector<1x64xf32>
    %cst_24 = arith.constant dense<0.000000e+00> : vector<1x8xf32>
    %59 = tpu.matmul %58, %57, %cst_24 {dimension_numbers = #tpu.dot_dimension_numbers<[1], [1], [0], [0], [0, 0, 1, 0], [], []>} : vector<1x64xf32>, vector<8x64xf32>, vector<1x8xf32> -> vector<1x8xf32>
    %c0_25 = arith.constant 0 : index
    %c0_26 = arith.constant 0 : index
    %60 = vector.load %arg9[%c0_25, %c0_26] : memref<1x1xf32, #tpu.memory_space<vmem>>, vector<1x1xf32>
    %61 = vector.broadcast %60 : vector<1x1xf32> to vector<1x8xf32>
    %62 = arith.addf %59, %61 : vector<1x8xf32>
    %c0_27 = arith.constant 0 : index
    %c0_28 = arith.constant 0 : index
    %63 = vector.load %arg10[%c0_27, %c0_28] : memref<1x8xf32, #tpu.memory_space<vmem>>, vector<1x8xf32>
    tpu.vector_store %arg10[%c0_27, %c0_28], %62 {strides = array<i32>} : memref<1x8xf32, #tpu.memory_space<vmem>>, vector<1x8xf32>,
    return
  }
  func.func @transform_0(%arg0: i32) -> (i32, i32) {
    %c0_i32 = arith.constant 0 : i32
    %c0_i32_0 = arith.constant 0 : i32
    return %arg0, %c0_i32 : i32, i32
  }
  func.func @transform_1(%arg0: i32) -> (i32, i32) {
    %c0_i32 = arith.constant 0 : i32
    %c0_i32_0 = arith.constant 0 : i32
    return %c0_i32, %arg0 : i32, i32
  }
  func.func @transform_2(%arg0: i32) -> (i32, i32) {
    %c0_i32 = arith.constant 0 : i32
    %c0_i32_0 = arith.constant 0 : i32
    %c0_i32_1 = arith.constant 0 : i32
    return %c0_i32, %c0_i32_0 : i32, i32
  }
  func.func @transform_3(%arg0: i32) -> (i32, i32) {
    %c0_i32 = arith.constant 0 : i32
    %c0_i32_0 = arith.constant 0 : i32
    %c0_i32_1 = arith.constant 0 : i32
    return %c0_i32, %c0_i32_0 : i32, i32
  }
  func.func @transform_4(%arg0: i32) -> (i32, i32) {
    %c0_i32 = arith.constant 0 : i32
    %c0_i32_0 = arith.constant 0 : i32
    %c0_i32_1 = arith.constant 0 : i32
    return %c0_i32, %c0_i32_0 : i32, i32
  }
  func.func @transform_5(%arg0: i32) -> (i32, i32) {
    %c0_i32 = arith.constant 0 : i32
    %c0_i32_0 = arith.constant 0 : i32
    %c0_i32_1 = arith.constant 0 : i32
    return %c0_i32, %c0_i32_0 : i32, i32
  }
  func.func @transform_6(%arg0: i32) -> (i32, i32) {
    %c0_i32 = arith.constant 0 : i32
    %c0_i32_0 = arith.constant 0 : i32
    %c0_i32_1 = arith.constant 0 : i32
    return %c0_i32, %c0_i32_0 : i32, i32
  }
  func.func @transform_7(%arg0: i32) -> (i32, i32) {
    %c0_i32 = arith.constant 0 : i32
    %c0_i32_0 = arith.constant 0 : i32
    %c0_i32_1 = arith.constant 0 : i32
    return %c0_i32, %c0_i32_0 : i32, i32
  }
  func.func @transform_8(%arg0: i32) -> (i32, i32) {
    %c0_i32 = arith.constant 0 : i32
    %c0_i32_0 = arith.constant 0 : i32
    %c0_i32_1 = arith.constant 0 : i32
    return %c0_i32, %c0_i32_0 : i32, i32
  }
  func.func @transform_9(%arg0: i32) -> (i32, i32) {
    %c0_i32 = arith.constant 0 : i32
    %c0_i32_0 = arith.constant 0 : i32
    return %arg0, %c0_i32 : i32, i32
  }
}

</mosaic_0001>

<llo_original>
// kernel: tpu_custom_call.1
$region0: #{tpu_custom_call.1}
  #allocation0 [shape = 'u32[]', space=smem, size = 0x4, offset = 0x4, fixed_abs, tag = 'smem constant byte address 0x4 - core index']
  #allocation1 [shape = 'u32[144,128]{1,0:T(1,128)}', space=vmem, size = 0x12000, scoped, tag = 'internal scratch']
  #allocation2 [shape = 'f32[1,1]{1,0:T(1,128)S(1)}', space=vmem, size = 0x200, scoped, tag = 'scoped memory for tpu_custom_call.1']
  %s0 = inlined_call_operand.vmem [shape: f32[128,32], index: 0, kind: input, shape index: {}]
  %s1 = inlined_call_operand.vmem [shape: f32[2,128], index: 1, kind: input, shape index: {}]
  %s2 = inlined_call_operand.vmem [shape: f32[32,32], index: 2, kind: input, shape index: {}]
  %s3 = inlined_call_operand.vmem [shape: f32[1,32], index: 3, kind: input, shape index: {}]
  %s4 = inlined_call_operand.vmem [shape: f32[32,64], index: 4, kind: input, shape index: {}]
  %s5 = inlined_call_operand.vmem [shape: f32[32,64], index: 5, kind: input, shape index: {}]
  %s6 = inlined_call_operand.vmem [shape: f32[1,64], index: 6, kind: input, shape index: {}]
  %s7 = inlined_call_operand.vmem [shape: f32[1,64], index: 7, kind: input, shape index: {}]
  %s8 = inlined_call_operand.<no memory space> [shape: f32[1,1], index: 8, kind: input, shape index: {}]
  %s9 = inlined_call_operand.hbm [shape: f32[1,8], index: 9, kind: output, shape index: {}]
  %s10 = sld [smem:[#allocation0]]
  $region46: #{tpu_custom_call.1} parent=0
    _
  %s12 = ssub.s32 1, %s10
  %s13 = scalar_select 0, %s12, %s10
  %v14 = vstv %s8
  %15 = vst [vmem:[#allocation2] sm:$0x1] %v14
  $region1: #{tpu_custom_call.1} parent=0
    #allocation3 [shape = 'u8[512]{0}', space=vmem, size = 0x400, scoped, tag = 'output window, operand 0, single buffered']
    #allocation4 [shape = 's32[1]{0}', space=sflag, size = 0x4, scoped, tag = 'scoped memory for tpu_custom_call.1']
    %16 = vsyncpa [#allocation4], 0
    // Predicated region
    $region2: #{tpu_custom_call.1} parent=1 // pred_check
      _
    $region3: #{tpu_custom_call.1} parent=1 // pred_check_branch
      %18 = sbr.rel (0) target = $region5
    $region4: #{tpu_custom_call.1} parent=1 // pred_region
      _
    $region5: #{tpu_custom_call.1} parent=1 // pred_fallthru
      _
    // Predicated region
    $region6: #{tpu_custom_call.1} parent=1 // pred_check
      _
    $region7: #{tpu_custom_call.1} parent=1 // pred_check_branch
      %20 = sbr.rel (0) target = $region9
    $region8: #{tpu_custom_call.1} parent=1 // pred_region
      _
    $region9: #{tpu_custom_call.1} parent=1 // pred_fallthru
      _
    // Predicated region
    $region10: #{tpu_custom_call.1} parent=1 // pred_check
      _
    $region11: #{tpu_custom_call.1} parent=1 // pred_check_branch
      %22 = sbr.rel (0) target = $region13
    $region12: #{tpu_custom_call.1} parent=1 // pred_region
      _
    $region13: #{tpu_custom_call.1} parent=1 // pred_fallthru
      _
    // Predicated region
    $region14: #{tpu_custom_call.1} parent=1 // pred_check
      _
    $region15: #{tpu_custom_call.1} parent=1 // pred_check_branch
      %24 = sbr.rel (0) target = $region17
    $region16: #{tpu_custom_call.1} parent=1 // pred_region
      _
    $region17: #{tpu_custom_call.1} parent=1 // pred_fallthru
      _
    // Predicated region
    $region18: #{tpu_custom_call.1} parent=1 // pred_check
      _
    $region19: #{tpu_custom_call.1} parent=1 // pred_check_branch
      %26 = sbr.rel (0) target = $region21
    $region20: #{tpu_custom_call.1} parent=1 // pred_region
      _
    $region21: #{tpu_custom_call.1} parent=1 // pred_fallthru
      _
    // Predicated region
    $region22: #{tpu_custom_call.1} parent=1 // pred_check
      _
    $region23: #{tpu_custom_call.1} parent=1 // pred_check_branch
      %28 = sbr.rel (0) target = $region25
    $region24: #{tpu_custom_call.1} parent=1 // pred_region
      _
    $region25: #{tpu_custom_call.1} parent=1 // pred_fallthru
      _
    // Predicated region
    $region26: #{tpu_custom_call.1} parent=1 // pred_check
      _
    $region27: #{tpu_custom_call.1} parent=1 // pred_check_branch
      %30 = sbr.rel (0) target = $region29
    $region28: #{tpu_custom_call.1} parent=1 // pred_region
      _
    $region29: #{tpu_custom_call.1} parent=1 // pred_fallthru
      _
    // Predicated region
    $region30: #{tpu_custom_call.1} parent=1 // pred_check
      _
    $region31: #{tpu_custom_call.1} parent=1 // pred_check_branch
      %32 = sbr.rel (0) target = $region33
    $region32: #{tpu_custom_call.1} parent=1 // pred_region
      _
    $region33: #{tpu_custom_call.1} parent=1 // pred_fallthru
      _
    // Predicated region
    $region34: #{tpu_custom_call.1} parent=1 // pred_check
      _
    $region35: #{tpu_custom_call.1} parent=1 // pred_check_branch
      %34 = sbr.rel (0) target = $region37
    $region36: #{tpu_custom_call.1} parent=1 // pred_region
      _
    $region37: #{tpu_custom_call.1} parent=1 // pred_fallthru
      _
    %v35 = vld [vmem:[%s0] sm:$0xff]
    %v36 = vld [vmem:[%s0 + $0x8] sm:$0xff]
    %v37 = vld [vmem:[%s0 + $0x10] sm:$0xff]
    %v38 = vld [vmem:[%s0 + $0x18] sm:$0xff]
    %v39 = vld [vmem:[%s0 + $0x20] sm:$0xff]
    %v40 = vld [vmem:[%s0 + $0x28] sm:$0xff]
    %v41 = vld [vmem:[%s0 + $0x30] sm:$0xff]
    %v42 = vld [vmem:[%s0 + $0x38] sm:$0xff]
    %v43 = vld [vmem:[%s0 + $0x40] sm:$0xff]
    %v44 = vld [vmem:[%s0 + $0x48] sm:$0xff]
    %v45 = vld [vmem:[%s0 + $0x50] sm:$0xff]
    %v46 = vld [vmem:[%s0 + $0x58] sm:$0xff]
    %v47 = vld [vmem:[%s0 + $0x60] sm:$0xff]
    %v48 = vld [vmem:[%s0 + $0x68] sm:$0xff]
    %v49 = vld [vmem:[%s0 + $0x70] sm:$0xff]
    %v50 = vld [vmem:[%s0 + $0x78] sm:$0xff]
    %v51 = vld [vmem:[%s2] sm:$0xff]
    %v52 = vld [vmem:[%s2 + $0x8] sm:$0xff]
    %v53 = vld [vmem:[%s2 + $0x10] sm:$0xff]
    %v54 = vld [vmem:[%s2 + $0x18] sm:$0xff]
    %v55 = vld [vmem:[%s3] sm:$0x1]
    %v57 = vlaneseq
    %v58 = vshrl.u32 %v57, 7
    %v59 = vsub.s32 0, %v58
    %v60 = vrot.slane %v55, %v59
    %vm62 = vcmask 261120
    %v64 = vsel %vm62, %v35, 0
    %v67 = vsel %vm62, %v36, 0
    %v70 = vsel %vm62, %v37, 0
    %v73 = vsel %vm62, %v38, 0
    %v76 = vsel %vm62, %v39, 0
    %v79 = vsel %vm62, %v40, 0
    %v82 = vsel %vm62, %v41, 0
    %v85 = vsel %vm62, %v42, 0
    %v88 = vsel %vm62, %v43, 0
    %v91 = vsel %vm62, %v44, 0
    %v94 = vsel %vm62, %v45, 0
    %v97 = vsel %vm62, %v46, 0
    %v100 = vsel %vm62, %v47, 0
    %v103 = vsel %vm62, %v48, 0
    %v106 = vsel %vm62, %v49, 0
    %v109 = vsel %vm62, %v50, 0
    %111 = vmatprep.subr.mxu0 0.0
    %112 = vmatpush1.msra.mxu0 %v51
    %113 = vmatprep.subr.mxu0 0.0
    %114 = vmatpush1.msra.mxu0 %v52
    %115 = vmatprep.subr.mxu0 0.0
    %116 = vmatpush1.msra.mxu0 %v53
    %117 = vmatprep.subr.mxu0 0.0
    %118 = vmatpush1.msra.mxu0 %v54
    %119 = vmatprep.subr.mxu0 0.0
    %120 = vmatpush1.msra.mxu0 0.0
    %121 = vmatprep.subr.mxu0 0.0
    %122 = vmatpush1.msra.mxu0 0.0
    %123 = vmatprep.subr.mxu0 0.0
    %124 = vmatpush1.msra.mxu0 0.0
    %125 = vmatprep.subr.mxu0 0.0
    %126 = vmatpush1.msra.mxu0 0.0
    %127 = vmatprep.subr.mxu0 0.0
    %128 = vmatpush1.msra.mxu0 0.0
    %129 = vmatprep.subr.mxu0 0.0
    %130 = vmatpush1.msra.mxu0 0.0
    %131 = vmatprep.subr.mxu0 0.0
    %132 = vmatpush1.msra.mxu0 0.0
    %133 = vmatprep.subr.mxu0 0.0
    %134 = vmatpush1.msra.mxu0 0.0
    %135 = vmatprep.subr.mxu0 0.0
    %136 = vmatpush1.msra.mxu0 0.0
    %137 = vmatprep.subr.mxu0 0.0
    %138 = vmatpush1.msra.mxu0 0.0
    %139 = vmatprep.subr.mxu0 0.0
    %140 = vmatpush1.msra.mxu0 0.0
    %141 = vmatprep.subr.mxu0 0.0
    %142 = vmatpush1.msra.mxu0 0.0
    %143 = vmatprep.subr.mxu0 0.0
    %144 = vmatpush1.msra.mxu0 0.0
    %145 = vmatprep.subr.mxu0 0.0
    %146 = vmatpush1.msra.mxu0 0.0
    %147 = vmatprep.subr.mxu0 0.0
    %148 = vmatpush1.msra.mxu0 0.0
    %149 = vmatprep.subr.mxu0 0.0
    %150 = vmatpush1.msra.mxu0 0.0
    %151 = vmatprep.subr.mxu0 0.0
    %152 = vmatpush1.msra.mxu0 0.0
    %153 = vmatprep.subr.mxu0 0.0
    %154 = vmatpush1.msra.mxu0 0.0
    %155 = vmatprep.subr.mxu0 0.0
    %156 = vmatpush1.msra.mxu0 0.0
    %157 = vmatprep.subr.mxu0 0.0
    %158 = vmatpush1.msra.mxu0 0.0
    %159 = vmatprep.subr.mxu0 0.0
    %160 = vmatpush1.msra.mxu0 0.0
    %161 = vmatprep.subr.mxu0 0.0
    %162 = vmatpush1.msra.mxu0 0.0
    %163 = vmatprep.subr.mxu0 0.0
    %164 = vmatpush1.msra.mxu0 0.0
    %165 = vmatprep.subr.mxu0 0.0
    %166 = vmatpush1.msra.mxu0 0.0
    %167 = vmatprep.subr.mxu0 0.0
    %168 = vmatpush1.msra.mxu0 0.0
    %169 = vmatprep.subr.mxu0 0.0
    %170 = vmatpush1.msra.mxu0 0.0
    %171 = vmatprep.subr.mxu0 0.0
    %172 = vmatpush1.msra.mxu0 0.0
    %173 = vmatprep.subr.mxu0 0.0
    %174 = vmatpush1.msra.mxu0 0.0
    %175 = vmatprep.mubr.f32.mxu0 0.0
    %176 = vmatmul.mubr.f32.gmra.mrb[0].mxu0 %v64
    %v177 = vpop.f32.mrb[0].mxu0
    %v178 = vadd.f32 %v60, %v177
    %v179 = vpop.f32.mrb[0].mxu0
    %180 = vmatprep.mubr.f32.mxu0 0.0
    %181 = vmatmul.mubr.f32.gmra.mrb[0].mxu0 %v67
    %v182 = vpop.f32.mrb[0].mxu0
    %v183 = vadd.f32 %v60, %v182
    %v184 = vpop.f32.mrb[0].mxu0
    %185 = vmatprep.mubr.f32.mxu0 0.0
    %186 = vmatmul.mubr.f32.gmra.mrb[0].mxu0 %v70
    %v187 = vpop.f32.mrb[0].mxu0
    %v188 = vadd.f32 %v60, %v187
    %v189 = vpop.f32.mrb[0].mxu0
    %190 = vmatprep.mubr.f32.mxu0 0.0
    %191 = vmatmul.mubr.f32.gmra.mrb[0].mxu0 %v73
    %v192 = vpop.f32.mrb[0].mxu0
    %v193 = vadd.f32 %v60, %v192
    %v194 = vpop.f32.mrb[0].mxu0
    %195 = vmatprep.mubr.f32.mxu0 0.0
    %196 = vmatmul.mubr.f32.gmra.mrb[0].mxu0 %v76
    %v197 = vpop.f32.mrb[0].mxu0
    %v198 = vadd.f32 %v60, %v197
    %v199 = vpop.f32.mrb[0].mxu0
    %200 = vmatprep.mubr.f32.mxu0 0.0
    %201 = vmatmul.mubr.f32.gmra.mrb[0].mxu0 %v79
    %v202 = vpop.f32.mrb[0].mxu0
    %v203 = vadd.f32 %v60, %v202
    %v204 = vpop.f32.mrb[0].mxu0
    %205 = vmatprep.mubr.f32.mxu0 0.0
    %206 = vmatmul.mubr.f32.gmra.mrb[0].mxu0 %v82
    %v207 = vpop.f32.mrb[0].mxu0
    %v208 = vadd.f32 %v60, %v207
    %v209 = vpop.f32.mrb[0].mxu0
    %210 = vmatprep.mubr.f32.mxu0 0.0
    %211 = vmatmul.mubr.f32.gmra.mrb[0].mxu0 %v85
    %v212 = vpop.f32.mrb[0].mxu0
    %v213 = vadd.f32 %v60, %v212
    %v214 = vpop.f32.mrb[0].mxu0
    %215 = vmatprep.mubr.f32.mxu0 0.0
    %216 = vmatmul.mubr.f32.gmra.mrb[0].mxu0 %v88
    %v217 = vpop.f32.mrb[0].mxu0
    %v218 = vadd.f32 %v60, %v217
    %v219 = vpop.f32.mrb[0].mxu0
    %220 = vmatprep.mubr.f32.mxu0 0.0
    %221 = vmatmul.mubr.f32.gmra.mrb[0].mxu0 %v91
    %v222 = vpop.f32.mrb[0].mxu0
    %v223 = vadd.f32 %v60, %v222
    %v224 = vpop.f32.mrb[0].mxu0
    %225 = vmatprep.mubr.f32.mxu0 0.0
    %226 = vmatmul.mubr.f32.gmra.mrb[0].mxu0 %v94
    %v227 = vpop.f32.mrb[0].mxu0
    %v228 = vadd.f32 %v60, %v227
    %v229 = vpop.f32.mrb[0].mxu0
    %230 = vmatprep.mubr.f32.mxu0 0.0
    %231 = vmatmul.mubr.f32.gmra.mrb[0].mxu0 %v97
    %v232 = vpop.f32.mrb[0].mxu0
    %v233 = vadd.f32 %v60, %v232
    %v234 = vpop.f32.mrb[0].mxu0
    %235 = vmatprep.mubr.f32.mxu0 0.0
    %236 = vmatmul.mubr.f32.gmra.mrb[0].mxu0 %v100
    %v237 = vpop.f32.mrb[0].mxu0
    %v238 = vadd.f32 %v60, %v237
    %v239 = vpop.f32.mrb[0].mxu0
    %240 = vmatprep.mubr.f32.mxu0 0.0
    %241 = vmatmul.mubr.f32.gmra.mrb[0].mxu0 %v103
    %v242 = vpop.f32.mrb[0].mxu0
    %v243 = vadd.f32 %v60, %v242
    %v244 = vpop.f32.mrb[0].mxu0
    %245 = vmatprep.mubr.f32.mxu0 0.0
    %246 = vmatmul.mubr.f32.gmra.mrb[0].mxu0 %v106
    %v247 = vpop.f32.mrb[0].mxu0
    %v248 = vadd.f32 %v60, %v247
    %v249 = vpop.f32.mrb[0].mxu0
    %250 = vmatprep.mubr.f32.mxu0 0.0
    %251 = vmatmul.mubr.f32.gmra.mrb[0].mxu0 %v109
    %v252 = vpop.f32.mrb[0].mxu0
    %v253 = vadd.f32 %v60, %v252
    %v254 = vpop.f32.mrb[0].mxu0
    %255 = vdwg.mxu0
    %v256 = vtanh.pop %v178
    %v257 = vtanh.pop %v183
    %v258 = vtanh.pop %v188
    %v259 = vtanh.pop %v193
    %v260 = vtanh.pop %v198
    %v261 = vtanh.pop %v203
    %v262 = vtanh.pop %v208
    %v263 = vtanh.pop %v213
    %v264 = vtanh.pop %v218
    %v265 = vtanh.pop %v223
    %v266 = vtanh.pop %v228
    %v267 = vtanh.pop %v233
    %v268 = vtanh.pop %v238
    %v269 = vtanh.pop %v243
    %v270 = vtanh.pop %v248
    %v271 = vtanh.pop %v253
    %v272 = vlaneseq
    %v273 = vshrl.u32 %v272, 7
    %v274 = vadd.s32 %v273, 8
    %v275 = vlaneseq
    %v276 = vand.u32 %v275, 127
    %vm277 = vcmp.lt.s32.totalorder %v273, 0
    %v278 = vsub.s32 0, %v273
    %v279 = vsel %vm277, %v278, %v273
    %v280 = vshrl.u32 %v279, 3
    %v281 = vand.u32 %v279, 7
    %v282 = vsub.s32 0, %v281
    %v283 = vsel %vm277, %v282, %v281
    %vm284 = vcmp.lt.s32.totalorder %v274, 0
    %v285 = vsub.s32 0, %v274
    %v286 = vsel %vm284, %v285, %v274
    %v287 = vshrl.u32 %v286, 3
    %v288 = vand.u32 %v286, 7
    %v289 = vsub.s32 0, %v288
    %v290 = vsel %vm284, %v289, %v288
    %vm291 = vcmp.ne.s32.totalorder %v283, 0
    %vm292 = vcmp.ne.s32.totalorder %v290, 0
    %vm293 = vcmp.lt.s32.totalorder %v283, 0
    %vm294 = vcmp.lt.s32.totalorder %v290, 0
    %vm295 = vmand %vm293, %vm291
    %vm296 = vmand %vm294, %vm292
    %v297 = vadd.s32 %v283, 8
    %v298 = vadd.s32 %v290, 8
    %v299 = vsel %vm295, %v297, %v283
    %v300 = vsel %vm296, %v298, %v290
    %v301 = vmul.u32 %v299, 16
    %v302 = vmul.u32 %v300, 16
    %vm303 = vcmp.ge.s32.totalorder %v276, %v301
    %vm304 = vcmp.ge.s32.totalorder %v276, %v302
    %v305 = vadd.s32 %v301, 16
    %v306 = vadd.s32 %v302, 16
    %vm307 = vcmp.lt.s32.totalorder %v276, %v305
    %vm308 = vcmp.lt.s32.totalorder %v276, %v306
    %vm309 = vmand %vm303, %vm307
    %vm310 = vmand %vm304, %vm308
    %v311 = vsel %vm309, 1, 0
    %v312 = vsel %vm310, 1, 0
    %v313 = vcvt.s32.f32 %v311
    %v314 = vcvt.s32.f32 %v312
    %v315 = vld [vmem:[%s1] sm:$0x3]
    %vm316 = vcmp.lt.s32.totalorder %v273, 8
    %vm317 = vcmp.lt.s32.totalorder %v274, 8
    %v318 = vlaneseq
    %v319 = vshrl.u32 %v318, 7
    %v320 = vsub.s32 0, %v319
    %v321 = vrot.slane %v315, %v320
    %v322 = vlaneseq
    %v323 = vshrl.u32 %v322, 7
    %v324 = vsub.s32 1, %v323
    %v325 = vrot.slane %v315, %v324
    %v326 = vsel %vm316, %v321, %v325
    %v327 = vsel %vm317, %v321, %v325
    %v328 = vmul.f32 %v313, %v326
    %v329 = vmul.f32 %v314, %v327
    %330 = vmatprep.subr.mxu0 0.0
    %331 = vmatpush1.msra.mxu0 %v256
    %332 = vmatprep.subr.mxu0 0.0
    %333 = vmatpush1.msra.mxu0 %v257
    %334 = vmatprep.subr.mxu0 0.0
    %335 = vmatpush1.msra.mxu0 %v258
    %336 = vmatprep.subr.mxu0 0.0
    %337 = vmatpush1.msra.mxu0 %v259
    %338 = vmatprep.subr.mxu0 0.0
    %339 = vmatpush1.msra.mxu0 %v260
    %340 = vmatprep.subr.mxu0 0.0
    %341 = vmatpush1.msra.mxu0 %v261
    %342 = vmatprep.subr.mxu0 0.0
    %343 = vmatpush1.msra.mxu0 %v262
    %344 = vmatprep.subr.mxu0 0.0
    %345 = vmatpush1.msra.mxu0 %v263
    %346 = vmatprep.subr.mxu0 0.0
    %347 = vmatpush1.msra.mxu0 %v264
    %348 = vmatprep.subr.mxu0 0.0
    %349 = vmatpush1.msra.mxu0 %v265
    %350 = vmatprep.subr.mxu0 0.0
    %351 = vmatpush1.msra.mxu0 %v266
    %352 = vmatprep.subr.mxu0 0.0
    %353 = vmatpush1.msra.mxu0 %v267
    %354 = vmatprep.subr.mxu0 0.0
    %355 = vmatpush1.msra.mxu0 %v268
    %356 = vmatprep.subr.mxu0 0.0
    %357 = vmatpush1.msra.mxu0 %v269
    %358 = vmatprep.subr.mxu0 0.0
    %359 = vmatpush1.msra.mxu0 %v270
    %360 = vmatprep.subr.mxu0 0.0
    %361 = vmatpush1.msra.mxu0 %v271
    %362 = vmatprep.subr.mxu0 0.0
    %363 = vmatpush1.msra.mxu0 0.0
    %364 = vmatprep.subr.mxu0 0.0
    %365 = vmatpush1.msra.mxu0 0.0
    %366 = vmatprep.subr.mxu0 0.0
    %367 = vmatpush1.msra.mxu0 0.0
    %368 = vmatprep.subr.mxu0 0.0
    %369 = vmatpush1.msra.mxu0 0.0
    %370 = vmatprep.subr.mxu0 0.0
    %371 = vmatpush1.msra.mxu0 0.0
    %372 = vmatprep.subr.mxu0 0.0
    %373 = vmatpush1.msra.mxu0 0.0
    %374 = vmatprep.subr.mxu0 0.0
    %375 = vmatpush1.msra.mxu0 0.0
    %376 = vmatprep.subr.mxu0 0.0
    %377 = vmatpush1.msra.mxu0 0.0
    %378 = vmatprep.subr.mxu0 0.0
    %379 = vmatpush1.msra.mxu0 0.0
    %380 = vmatprep.subr.mxu0 0.0
    %381 = vmatpush1.msra.mxu0 0.0
    %382 = vmatprep.subr.mxu0 0.0
    %383 = vmatpush1.msra.mxu0 0.0
    %384 = vmatprep.subr.mxu0 0.0
    %385 = vmatpush1.msra.mxu0 0.0
    %386 = vmatprep.subr.mxu0 0.0
    %387 = vmatpush1.msra.mxu0 0.0
    %388 = vmatprep.subr.mxu0 0.0
    %389 = vmatpush1.msra.mxu0 0.0
    %390 = vmatprep.subr.mxu0 0.0
    %391 = vmatpush1.msra.mxu0 0.0
    %392 = vmatprep.subr.mxu0 0.0
    %393 = vmatpush1.msra.mxu0 0.0
    %394 = vmatprep.mubr.f32.mxu0 0.0
    %395 = vmatmul.mubr.f32.gmra.mrb[0].mxu0 %v328
    %v396 = vpop.f32.mrb[0].mxu0
    %v397 = vadd.f32 0.0, %v396
    %v398 = vpop.f32.mrb[0].mxu0
    %399 = vmatprep.mubr.f32.mxu0 0.0
    %400 = vmatmul.mubr.f32.gmra.mrb[0].mxu0 %v329
    %v401 = vpop.f32.mrb[0].mxu0
    %v402 = vadd.f32 0.0, %v401
    %v403 = vpop.f32.mrb[0].mxu0
    %404 = vdwg.mxu0
    %v405 = vld [vmem:[%s4] sm:$0xff]
    %v406 = vld [vmem:[%s4 + $0x8] sm:$0xff]
    %v407 = vld [vmem:[%s4 + $0x10] sm:$0xff]
    %v408 = vld [vmem:[%s4 + $0x18] sm:$0xff]
    %v409 = vld [vmem:[%s5] sm:$0xff]
    %v410 = vld [vmem:[%s5 + $0x8] sm:$0xff]
    %v411 = vld [vmem:[%s5 + $0x10] sm:$0xff]
    %v412 = vld [vmem:[%s5 + $0x18] sm:$0xff]
    %v414 = vsel %vm62, %v402, 0
    %416 = vmatprep.subr.mxu0 0.0
    %417 = vmatpush1.msra.mxu0 %v409
    %418 = vmatprep.subr.mxu0 0.0
    %419 = vmatpush1.msra.mxu0 %v410
    %420 = vmatprep.subr.mxu0 0.0
    %421 = vmatpush1.msra.mxu0 %v411
    %422 = vmatprep.subr.mxu0 0.0
    %423 = vmatpush1.msra.mxu0 %v412
    %424 = vmatprep.subr.mxu0 0.0
    %425 = vmatpush1.msra.mxu0 0.0
    %426 = vmatprep.subr.mxu0 0.0
    %427 = vmatpush1.msra.mxu0 0.0
    %428 = vmatprep.subr.mxu0 0.0
    %429 = vmatpush1.msra.mxu0 0.0
    %430 = vmatprep.subr.mxu0 0.0
    %431 = vmatpush1.msra.mxu0 0.0
    %432 = vmatprep.subr.mxu0 0.0
    %433 = vmatpush1.msra.mxu0 0.0
    %434 = vmatprep.subr.mxu0 0.0
    %435 = vmatpush1.msra.mxu0 0.0
    %436 = vmatprep.subr.mxu0 0.0
    %437 = vmatpush1.msra.mxu0 0.0
    %438 = vmatprep.subr.mxu0 0.0
    %439 = vmatpush1.msra.mxu0 0.0
    %440 = vmatprep.subr.mxu0 0.0
    %441 = vmatpush1.msra.mxu0 0.0
    %442 = vmatprep.subr.mxu0 0.0
    %443 = vmatpush1.msra.mxu0 0.0
    %444 = vmatprep.subr.mxu0 0.0
    %445 = vmatpush1.msra.mxu0 0.0
    %446 = vmatprep.subr.mxu0 0.0
    %447 = vmatpush1.msra.mxu0 0.0
    %448 = vmatprep.subr.mxu0 0.0
    %449 = vmatpush1.msra.mxu0 0.0
    %450 = vmatprep.subr.mxu0 0.0
    %451 = vmatpush1.msra.mxu0 0.0
    %452 = vmatprep.subr.mxu0 0.0
    %453 = vmatpush1.msra.mxu0 0.0
    %454 = vmatprep.subr.mxu0 0.0
    %455 = vmatpush1.msra.mxu0 0.0
    %456 = vmatprep.subr.mxu0 0.0
    %457 = vmatpush1.msra.mxu0 0.0
    %458 = vmatprep.subr.mxu0 0.0
    %459 = vmatpush1.msra.mxu0 0.0
    %460 = vmatprep.subr.mxu0 0.0
    %461 = vmatpush1.msra.mxu0 0.0
    %462 = vmatprep.subr.mxu0 0.0
    %463 = vmatpush1.msra.mxu0 0.0
    %464 = vmatprep.subr.mxu0 0.0
    %465 = vmatpush1.msra.mxu0 0.0
    %466 = vmatprep.subr.mxu0 0.0
    %467 = vmatpush1.msra.mxu0 0.0
    %468 = vmatprep.subr.mxu0 0.0
    %469 = vmatpush1.msra.mxu0 0.0
    %470 = vmatprep.subr.mxu0 0.0
    %471 = vmatpush1.msra.mxu0 0.0
    %472 = vmatprep.subr.mxu0 0.0
    %473 = vmatpush1.msra.mxu0 0.0
    %474 = vmatprep.subr.mxu0 0.0
    %475 = vmatpush1.msra.mxu0 0.0
    %476 = vmatprep.subr.mxu0 0.0
    %477 = vmatpush1.msra.mxu0 0.0
    %478 = vmatprep.subr.mxu0 0.0
    %479 = vmatpush1.msra.mxu0 0.0
    %480 = vmatprep.mubr.f32.mxu0 0.0
    %481 = vmatmul.mubr.f32.gmra.mrb[0].mxu0 %v414
    %v482 = vpop.f32.mrb[0].mxu0
    %v483 = vadd.f32 0.0, %v482
    %v484 = vpop.f32.mrb[0].mxu0
    %485 = vdwg.mxu0
    %v487 = vsel %vm62, %v397, 0
    %489 = vmatprep.subr.mxu0 0.0
    %490 = vmatpush1.msra.mxu0 %v405
    %491 = vmatprep.subr.mxu0 0.0
    %492 = vmatpush1.msra.mxu0 %v406
    %493 = vmatprep.subr.mxu0 0.0
    %494 = vmatpush1.msra.mxu0 %v407
    %495 = vmatprep.subr.mxu0 0.0
    %496 = vmatpush1.msra.mxu0 %v408
    %497 = vmatprep.subr.mxu0 0.0
    %498 = vmatpush1.msra.mxu0 0.0
    %499 = vmatprep.subr.mxu0 0.0
    %500 = vmatpush1.msra.mxu0 0.0
    %501 = vmatprep.subr.mxu0 0.0
    %502 = vmatpush1.msra.mxu0 0.0
    %503 = vmatprep.subr.mxu0 0.0
    %504 = vmatpush1.msra.mxu0 0.0
    %505 = vmatprep.subr.mxu0 0.0
    %506 = vmatpush1.msra.mxu0 0.0
    %507 = vmatprep.subr.mxu0 0.0
    %508 = vmatpush1.msra.mxu0 0.0
    %509 = vmatprep.subr.mxu0 0.0
    %510 = vmatpush1.msra.mxu0 0.0
    %511 = vmatprep.subr.mxu0 0.0
    %512 = vmatpush1.msra.mxu0 0.0
    %513 = vmatprep.subr.mxu0 0.0
    %514 = vmatpush1.msra.mxu0 0.0
    %515 = vmatprep.subr.mxu0 0.0
    %516 = vmatpush1.msra.mxu0 0.0
    %517 = vmatprep.subr.mxu0 0.0
    %518 = vmatpush1.msra.mxu0 0.0
    %519 = vmatprep.subr.mxu0 0.0
    %520 = vmatpush1.msra.mxu0 0.0
    %521 = vmatprep.subr.mxu0 0.0
    %522 = vmatpush1.msra.mxu0 0.0
    %523 = vmatprep.subr.mxu0 0.0
    %524 = vmatpush1.msra.mxu0 0.0
    %525 = vmatprep.subr.mxu0 0.0
    %526 = vmatpush1.msra.mxu0 0.0
    %527 = vmatprep.subr.mxu0 0.0
    %528 = vmatpush1.msra.mxu0 0.0
    %529 = vmatprep.subr.mxu0 0.0
    %530 = vmatpush1.msra.mxu0 0.0
    %531 = vmatprep.subr.mxu0 0.0
    %532 = vmatpush1.msra.mxu0 0.0
    %533 = vmatprep.subr.mxu0 0.0
    %534 = vmatpush1.msra.mxu0 0.0
    %535 = vmatprep.subr.mxu0 0.0
    %536 = vmatpush1.msra.mxu0 0.0
    %537 = vmatprep.subr.mxu0 0.0
    %538 = vmatpush1.msra.mxu0 0.0
    %539 = vmatprep.subr.mxu0 0.0
    %540 = vmatpush1.msra.mxu0 0.0
    %541 = vmatprep.subr.mxu0 0.0
    %542 = vmatpush1.msra.mxu0 0.0
    %543 = vmatprep.subr.mxu0 0.0
    %544 = vmatpush1.msra.mxu0 0.0
    %545 = vmatprep.subr.mxu0 0.0
    %546 = vmatpush1.msra.mxu0 0.0
    %547 = vmatprep.subr.mxu0 0.0
    %548 = vmatpush1.msra.mxu0 0.0
    %549 = vmatprep.subr.mxu0 0.0
    %550 = vmatpush1.msra.mxu0 0.0
    %551 = vmatprep.subr.mxu0 0.0
    %552 = vmatpush1.msra.mxu0 0.0
    %553 = vmatprep.mubr.f32.mxu0 0.0
    %554 = vmatmul.mubr.f32.gmra.mrb[0].mxu0 %v487
    %v555 = vpop.f32.mrb[0].mxu0
    %v556 = vadd.f32 %v483, %v555
    %v557 = vpop.f32.mrb[0].mxu0
    %558 = vdwg.mxu0
    %v559 = vld [vmem:[%s6] sm:$0x1]
    %v561 = vlaneseq
    %v562 = vshrl.u32 %v561, 7
    %v563 = vsub.s32 0, %v562
    %v564 = vrot.slane %v559, %v563
    %v566 = vadd.f32 %v556, %v564
    %v567 = vmax.f32 %v566, 0.0
    %v568 = vld [vmem:[%s7] sm:$0x1]
    %v569 = vld [vmem:[#allocation2] sm:$0x1]
    %571 = vset.pattern.permute.xlu0 0
    %572 = vperm.xlu0 %571, %v569
    %v573 = vpop.permute.xlu0 %572
    %v575 = vlaneseq
    %v576 = vshrl.u32 %v575, 7
    %v577 = vsub.s32 0, %v576
    %v578 = vrot.slane %v573, %v577
    %vm579 = vcmask 523264
    %v581 = vsel %vm579, %v568, 0
    %v584 = vsel %vm579, %v567, 0
    %586 = vmatprep.subr.mxu0 0.0
    %587 = vmatpush1.xpose.msra.mxu0 %v584
    %588 = vmatprep.subr.mxu0 0.0
    %589 = vmatpush1.xpose.msra.mxu0 0.0
    %590 = vmatprep.subr.mxu0 0.0
    %591 = vmatpush1.xpose.msra.mxu0 0.0
    %592 = vmatprep.subr.mxu0 0.0
    %593 = vmatpush1.xpose.msra.mxu0 0.0
    %594 = vmatprep.subr.mxu0 0.0
    %595 = vmatpush1.xpose.msra.mxu0 0.0
    %596 = vmatprep.subr.mxu0 0.0
    %597 = vmatpush1.xpose.msra.mxu0 0.0
    %598 = vmatprep.subr.mxu0 0.0
    %599 = vmatpush1.xpose.msra.mxu0 0.0
    %600 = vmatprep.subr.mxu0 0.0
    %601 = vmatpush1.xpose.msra.mxu0 0.0
    %602 = vmatprep.subr.mxu0 0.0
    %603 = vmatpush1.xpose.msra.mxu0 0.0
    %604 = vmatprep.subr.mxu0 0.0
    %605 = vmatpush1.xpose.msra.mxu0 0.0
    %606 = vmatprep.subr.mxu0 0.0
    %607 = vmatpush1.xpose.msra.mxu0 0.0
    %608 = vmatprep.subr.mxu0 0.0
    %609 = vmatpush1.xpose.msra.mxu0 0.0
    %610 = vmatprep.subr.mxu0 0.0
    %611 = vmatpush1.xpose.msra.mxu0 0.0
    %612 = vmatprep.subr.mxu0 0.0
    %613 = vmatpush1.xpose.msra.mxu0 0.0
    %614 = vmatprep.subr.mxu0 0.0
    %615 = vmatpush1.xpose.msra.mxu0 0.0
    %616 = vmatprep.subr.mxu0 0.0
    %617 = vmatpush1.xpose.msra.mxu0 0.0
    %618 = vmatprep.subr.mxu0 0.0
    %619 = vmatpush1.xpose.msra.mxu0 0.0
    %620 = vmatprep.subr.mxu0 0.0
    %621 = vmatpush1.xpose.msra.mxu0 0.0
    %622 = vmatprep.subr.mxu0 0.0
    %623 = vmatpush1.xpose.msra.mxu0 0.0
    %624 = vmatprep.subr.mxu0 0.0
    %625 = vmatpush1.xpose.msra.mxu0 0.0
    %626 = vmatprep.subr.mxu0 0.0
    %627 = vmatpush1.xpose.msra.mxu0 0.0
    %628 = vmatprep.subr.mxu0 0.0
    %629 = vmatpush1.xpose.msra.mxu0 0.0
    %630 = vmatprep.subr.mxu0 0.0
    %631 = vmatpush1.xpose.msra.mxu0 0.0
    %632 = vmatprep.subr.mxu0 0.0
    %633 = vmatpush1.xpose.msra.mxu0 0.0
    %634 = vmatprep.subr.mxu0 0.0
    %635 = vmatpush1.xpose.msra.mxu0 0.0
    %636 = vmatprep.subr.mxu0 0.0
    %637 = vmatpush1.xpose.msra.mxu0 0.0
    %638 = vmatprep.subr.mxu0 0.0
    %639 = vmatpush1.xpose.msra.mxu0 0.0
    %640 = vmatprep.subr.mxu0 0.0
    %641 = vmatpush1.xpose.msra.mxu0 0.0
    %642 = vmatprep.subr.mxu0 0.0
    %643 = vmatpush1.xpose.msra.mxu0 0.0
    %644 = vmatprep.subr.mxu0 0.0
    %645 = vmatpush1.xpose.msra.mxu0 0.0
    %646 = vmatprep.subr.mxu0 0.0
    %647 = vmatpush1.xpose.msra.mxu0 0.0
    %648 = vmatprep.subr.mxu0 0.0
    %649 = vmatpush1.xpose.msra.mxu0 0.0
    %650 = vmatprep.mubr.f32.mxu0 0.0
    %651 = vmatmul.mubr.f32.gmra.mrb[0].mxu0 %v581
    %v652 = vpop.f32.mrb[0].mxu0
    %v653 = vadd.f32 %v578, %v652
    %v654 = vpop.f32.mrb[0].mxu0
    %655 = vdwg.mxu0
    %vm656 = vcmask 57344
    %657 = vst.msk [vmem:[#allocation3] sm:$0x1] %vm656, %v653
    // Predicated region
    $region38: #{tpu_custom_call.1} parent=1 // pred_check
      _
    $region39: #{tpu_custom_call.1} parent=1 // pred_check_branch
      %659 = sbr.rel (0) target = $region41
    $region40: #{tpu_custom_call.1} parent=1 // pred_region
      %s661 = ssub.s32 16, 16
      %662 = vsyncadd [#allocation4], %s661
      %s664 = sshll.u32 [#allocation3], 4
      %s665 = int_to_ptr.vmem [resolvable:$true] %s664
      %667 = dma.vmem_to_hbm [thread:$0]  %s665, 16, %s9, [#allocation4]
    $region41: #{tpu_custom_call.1} parent=1 // pred_fallthru
      _
    // Predicated region
    $region42: #{tpu_custom_call.1} parent=1 // pred_check
      _
    $region43: #{tpu_custom_call.1} parent=1 // pred_check_branch
      %669 = sbr.rel (0) target = $region45
    $region44: #{tpu_custom_call.1} parent=1 // pred_region
      %670 = dma.done [#allocation4], 16
    $region45: #{tpu_custom_call.1} parent=1 // pred_fallthru
      _
    %671 = vsyncpa [#allocation4], 1

</llo_original>
